<compile_context>
chip_gen: v7x
topology: tpu7x:2x2x1
jax: 0.10.0
libtpu: 0.0.40
codegen_flags: <defaults>
</compile_context>

<pallas_src>
import functools

import jax
import jax.numpy as jnp
from jax.experimental import pallas as pl
from jax.experimental.pallas import tpu as pltpu

CLASSES = 42
SMOOTHING = 0.6


def _round_up(x, m):
    return ((x + m - 1) // m) * m


def _label_smoothing_kernel(pred_ref, tgt_ref, out_ref, acc_ref, *,
                            classes, smoothing, total_b, tile_b):
    confidence = 1.0 - smoothing
    smooth_val = smoothing / (classes - 1)

    step = pl.program_id(0)

    @pl.when(step == 0)
    def _():
        acc_ref[0] = jnp.float32(0.0)

    pred = pred_ref[...].astype(jnp.float32)            # (TB, C)
    tgt = tgt_ref[...]                                  # (TB, 1) int32

    # Numerically stable log_softmax along the class axis (keepdims shapes).
    m = jnp.max(pred, axis=-1, keepdims=True)           # (TB, 1)
    shifted = pred - m                                  # (TB, C)
    lse = jnp.log(jnp.sum(jnp.exp(shifted), axis=-1, keepdims=True))   # (TB, 1)

    # sum_c logp = sum_c shifted - C * lse
    row_sum_logp = jnp.sum(shifted, axis=-1, keepdims=True) - classes * lse

    # logp[target] = shifted[target] - lse, via a masked row reduce
    # (no (TB, C) true_dist temp is materialized).
    col = jax.lax.broadcasted_iota(jnp.int32, pred.shape, 1)
    shifted_at_tgt = jnp.sum(jnp.where(col == tgt, shifted, 0.0),
                             axis=-1, keepdims=True)    # (TB, 1)
    logp_at_tgt = shifted_at_tgt - lse                  # (TB, 1)

    per_row = -(smooth_val * row_sum_logp
                + (confidence - smooth_val) * logp_at_tgt)   # (TB, 1)

    # Mask out the padded rows of the last (partial) batch tile.
    row = jax.lax.broadcasted_iota(jnp.int32, per_row.shape, 0)
    valid = (step * tile_b + row) < total_b
    per_row = jnp.where(valid, per_row, 0.0)

    acc_ref[0] += jnp.sum(per_row)

    @pl.when(step == pl.num_programs(0) - 1)
    def _():
        out_ref[0, 0] = acc_ref[0] / jnp.float32(total_b)


def label_smoothing_loss(pred, target, *, classes=CLASSES, smoothing=SMOOTHING,
                         tile_b=2048):
    """pred: (B, classes) float32, target: (B,) int class ids -> scalar float32."""
    B, C = pred.shape
    assert C == classes
    tb = min(_round_up(tile_b, 8), _round_up(B, 8))     # sublane-aligned batch tile
    grid = (pl.cdiv(B, tb),)
    tgt2d = target.astype(jnp.int32).reshape(B, 1)

    kernel = functools.partial(
        _label_smoothing_kernel,
        classes=classes, smoothing=smoothing, total_b=B, tile_b=tb)

    out = pl.pallas_call(
        kernel,
        out_shape=jax.ShapeDtypeStruct((1, 1), jnp.float32),
        grid=grid,
        in_specs=[
            pl.BlockSpec((tb, C), lambda i: (i, 0)),    # pipelined pred tiles
            pl.BlockSpec((tb, 1), lambda i: (i, 0)),    # matching target tiles
        ],
        out_specs=pl.BlockSpec(
            (1, 1), lambda i: (0, 0), memory_space=pltpu.MemorySpace.SMEM),
        scratch_shapes=[pltpu.SMEM((1,), jnp.float32)],  # running sum across tiles
        compiler_params=pltpu.CompilerParams(
            dimension_semantics=("arbitrary",)),
    )(pred, tgt2d)
    return out[0, 0]


def _reference_loss(pred, target, classes=CLASSES, smoothing=SMOOTHING):
    confidence = 1.0 - smoothing
    logp = jax.nn.log_softmax(pred, axis=-1)
    true_dist = jnp.full_like(logp, smoothing / (classes - 1))
    true_dist = true_dist.at[jnp.arange(pred.shape[0]), target].set(confidence)
    return jnp.mean(jnp.sum(-true_dist * logp, axis=-1))


if __name__ == "__main__":
    key = jax.random.PRNGKey(0)
    k1, k2 = jax.random.split(key)

    batch = 20   # deliberately not a multiple of the tile to exercise masking
    pred = jax.random.normal(k1, (batch, CLASSES), dtype=jnp.float32)
    target = jax.random.randint(k2, (batch,), 0, CLASSES, dtype=jnp.int32)

    # Tiled path: grid of 3 steps (8 + 8 + partial tile with 4 valid rows).
    loss_tiled = jax.block_until_ready(
        label_smoothing_loss(pred, target, tile_b=8))
    # Default tile size path (single tile at this small batch).
    loss_default = jax.block_until_ready(label_smoothing_loss(pred, target))

    ref = _reference_loss(pred, target)
    assert jnp.allclose(loss_tiled, ref, atol=1e-5, rtol=1e-5), (loss_tiled, ref)
    assert jnp.allclose(loss_default, ref, atol=1e-5, rtol=1e-5), (loss_default, ref)

    print("KERNEL_OK")
</pallas_src>

<mosaic_0001>
module attributes {stable_mosaic.version = 11 : i64} {
  func.func @_label_smoothing_kernel(%arg0: i32, %arg1: memref<8x42xf32, #tpu.memory_space<vmem>>, %arg2: memref<8x1xi32, #tpu.memory_space<vmem>>, %arg3: memref<1x1xf32, #tpu.memory_space<smem>>, %arg4: memref<1xf32, #tpu.memory_space<smem>>) attributes {dimension_semantics = [#tpu.dimension_semantics<arbitrary>], iteration_bounds = array<i64: 3>, scalar_prefetch = 0 : i64, scratch_operands = 1 : i64, tpu.core_type = #tpu.core_type<tc>, window_params = [{transform_indices = @transform_0, window_bounds = array<i64: 8, 42>}, {transform_indices = @transform_1, window_bounds = array<i64: 8, 1>}, {transform_indices = @transform_2, window_bounds = array<i64: 1, 1>}]} {
    %c0_i32 = arith.constant 0 : i32
    %0 = arith.cmpi eq, %arg0, %c0_i32 : i32
    %1 = arith.extui %0 : i1 to i32
    %c0_i32_0 = arith.constant 0 : i32
    %2 = arith.cmpi ne, %1, %c0_i32_0 : i32
    scf.if %2 {
      %cst_17 = arith.constant 0.000000e+00 : f32
      %c0_18 = arith.constant 0 : index
      %51 = memref.load %arg4[%c0_18] : memref<1xf32, #tpu.memory_space<smem>>
      memref.store %cst_17, %arg4[%c0_18] : memref<1xf32, #tpu.memory_space<smem>>
    } else {
    }
    %c0 = arith.constant 0 : index
    %c0_1 = arith.constant 0 : index
    %3 = vector.load %arg1[%c0, %c0_1] : memref<8x42xf32, #tpu.memory_space<vmem>>, vector<8x42xf32>
    %c0_2 = arith.constant 0 : index
    %c0_3 = arith.constant 0 : index
    %4 = vector.load %arg2[%c0_2, %c0_3] : memref<8x1xi32, #tpu.memory_space<vmem>>, vector<8x1xi32>
    %cst = arith.constant dense<0xFF800000> : vector<8xf32>
    %5 = vector.multi_reduction <maximumf>, %3, %cst [1] : vector<8x42xf32> to vector<8xf32>
    %6 = vector.shape_cast %5 : vector<8xf32> to vector<8x1xf32>
    %7 = vector.broadcast %6 : vector<8x1xf32> to vector<8x42xf32>
    %8 = arith.subf %3, %7 : vector<8x42xf32>
    %9 = math.exp %8 : vector<8x42xf32>
    %cst_4 = arith.constant dense<0.000000e+00> : vector<8xf32>
    %10 = vector.multi_reduction <add>, %9, %cst_4 [1] : vector<8x42xf32> to vector<8xf32>
    %11 = vector.shape_cast %10 : vector<8xf32> to vector<8x1xf32>
    %12 = math.log %11 : vector<8x1xf32>
    %cst_5 = arith.constant dense<0.000000e+00> : vector<8xf32>
    %13 = vector.multi_reduction <add>, %8, %cst_5 [1] : vector<8x42xf32> to vector<8xf32>
    %14 = vector.shape_cast %13 : vector<8xf32> to vector<8x1xf32>
    %cst_6 = arith.constant 4.200000e+01 : f32
    %15 = vector.broadcast %cst_6 : f32 to vector<8x1xf32>
    %16 = arith.mulf %15, %12 : vector<8x1xf32>
    %17 = arith.subf %14, %16 : vector<8x1xf32>
    %18 = tpu.iota {dimensions = array<i32: 1>} : vector<8x42xi32>
    %19 = vector.broadcast %4 : vector<8x1xi32> to vector<8x42xi32>
    %20 = arith.cmpi eq, %18, %19 : vector<8x42xi32>
    %cst_7 = arith.constant 0.000000e+00 : f32
    %21 = vector.broadcast %cst_7 : f32 to vector<8x42xf32>
    %22 = arith.select %20, %8, %21 : vector<8x42xi1>, vector<8x42xf32>
    %cst_8 = arith.constant dense<0.000000e+00> : vector<8xf32>
    %23 = vector.multi_reduction <add>, %22, %cst_8 [1] : vector<8x42xf32> to vector<8xf32>
    %24 = vector.shape_cast %23 : vector<8xf32> to vector<8x1xf32>
    %25 = arith.subf %24, %12 : vector<8x1xf32>
    %cst_9 = arith.constant 0.0146341464 : f32
    %26 = vector.broadcast %cst_9 : f32 to vector<8x1xf32>
    %27 = arith.mulf %26, %17 : vector<8x1xf32>
    %cst_10 = arith.constant 0.385365844 : f32
    %28 = vector.broadcast %cst_10 : f32 to vector<8x1xf32>
    %29 = arith.mulf %28, %25 : vector<8x1xf32>
    %30 = arith.addf %27, %29 : vector<8x1xf32>
    %cst_11 = arith.constant 0.000000e+00 : f32
    %31 = vector.broadcast %cst_11 : f32 to vector<8x1xf32>
    %32 = arith.subf %31, %30 : vector<8x1xf32>
    %33 = tpu.iota {dimensions = array<i32: 0>} : vector<8x1xi32>
    %c8_i32 = arith.constant 8 : i32
    %34 = arith.muli %arg0, %c8_i32 : i32
    %35 = vector.broadcast %34 : i32 to vector<8x1xi32>
    %36 = arith.addi %35, %33 : vector<8x1xi32>
    %c20_i32 = arith.constant 20 : i32
    %37 = vector.broadcast %c20_i32 : i32 to vector<8x1xi32>
    %38 = arith.cmpi slt, %36, %37 : vector<8x1xi32>
    %cst_12 = arith.constant 0.000000e+00 : f32
    %39 = vector.broadcast %cst_12 : f32 to vector<8x1xf32>
    %40 = arith.select %38, %32, %39 : vector<8x1xi1>, vector<8x1xf32>
    %c0_13 = arith.constant 0 : index
    %41 = memref.load %arg4[%c0_13] : memref<1xf32, #tpu.memory_space<smem>>
    %42 = vector.shape_cast %40 : vector<8x1xf32> to vector<1x8x1xf32>
    %cst_14 = arith.constant dense<0.000000e+00> : vector<1xf32>
    %43 = vector.multi_reduction <add>, %42, %cst_14 [1, 2] : vector<1x8x1xf32> to vector<1xf32>
    %44 = vector.shape_cast %43 : vector<1xf32> to vector<1x1x1xf32>
    %45 = vector.extract %44[0, 0, 0] : f32 from vector<1x1x1xf32>
    %46 = arith.addf %41, %45 : f32
    %c0_15 = arith.constant 0 : index
    %47 = memref.load %arg4[%c0_15] : memref<1xf32, #tpu.memory_space<smem>>
    memref.store %46, %arg4[%c0_15] : memref<1xf32, #tpu.memory_space<smem>>
    %c2_i32 = arith.constant 2 : i32
    %48 = arith.cmpi eq, %arg0, %c2_i32 : i32
    %49 = arith.extui %48 : i1 to i32
    %c0_i32_16 = arith.constant 0 : i32
    %50 = arith.cmpi ne, %49, %c0_i32_16 : i32
    scf.if %50 {
      %c0_17 = arith.constant 0 : index
      %51 = memref.load %arg4[%c0_17] : memref<1xf32, #tpu.memory_space<smem>>
      %cst_18 = arith.constant 2.000000e+01 : f32
      %52 = arith.divf %51, %cst_18 : f32
      %c0_19 = arith.constant 0 : index
      %c0_20 = arith.constant 0 : index
      %53 = memref.load %arg3[%c0_19, %c0_20] : memref<1x1xf32, #tpu.memory_space<smem>>
      memref.store %52, %arg3[%c0_19, %c0_20] : memref<1x1xf32, #tpu.memory_space<smem>>
    } else {
    }
    return
  }
  func.func @transform_0(%arg0: i32) -> (i32, i32) {
    %c0_i32 = arith.constant 0 : i32
    %c0_i32_0 = arith.constant 0 : i32
    return %arg0, %c0_i32 : i32, i32
  }
  func.func @transform_1(%arg0: i32) -> (i32, i32) {
    %c0_i32 = arith.constant 0 : i32
    %c0_i32_0 = arith.constant 0 : i32
    return %arg0, %c0_i32 : i32, i32
  }
  func.func @transform_2(%arg0: i32) -> (i32, i32) {
    %c0_i32 = arith.constant 0 : i32
    %c0_i32_0 = arith.constant 0 : i32
    %c0_i32_1 = arith.constant 0 : i32
    return %c0_i32, %c0_i32_0 : i32, i32
  }
}

</mosaic_0001>

<llo_original>
// kernel: tpu_custom_call.1
$region0: #{tpu_custom_call.1}
  #allocation0 [shape = 'u32[]', space=smem, size = 0x4, offset = 0x4, fixed_abs, tag = 'smem constant byte address 0x4 - core index']
  #allocation1 [shape = 'u32[144,128]{1,0:T(1,128)}', space=vmem, size = 0x12000, scoped, tag = 'internal scratch']
  #allocation2 [shape = 'f32[1]{0:T(128)}', space=smem, size = 0x200, scoped, tag = 'scratch operand']
  %s0 = inlined_call_operand.vmem [shape: f32[20,42], index: 0, kind: input, shape index: {}]
  %s1 = inlined_call_operand.vmem [shape: s32[20,1], index: 1, kind: input, shape index: {}]
  %s2 = inlined_call_operand.hbm [shape: f32[1,1], index: 2, kind: output, shape index: {}]
  %s3 = sld [smem:[#allocation0]]
  $region49: #{tpu_custom_call.1} parent=0
    _
  %s5 = ssub.s32 1, %s3
  %s6 = scalar_select 0, %s5, %s3
  $region1: #{tpu_custom_call.1} parent=0
    #allocation3 [shape = 'u8[512]{0}', space=smem, size = 0x200, scoped, tag = 'output window, operand 0, single buffered']
    #allocation4 [shape = 's32[2]{0}', space=sflag, size = 0x8, scoped, tag = 'scoped memory for tpu_custom_call.1']
    %7 = vsyncpa [#allocation4], 0
    loop: start=0, step=1, limit=5
    $region2: #{tpu_custom_call.1} parent=1 // loop_pre_header
      _
    $region3: #{tpu_custom_call.1} parent=1 // loop_header
      %s9 = sphi 0, %s13
      %p10 = scmp.ge.s32.totalorder %s9, 5
      %s19 = sphi 0, %s21
      %s22 = sphi 0, %s19
      %s23 = sphi 0, %s22
      %s39 = sphi 0, %s23
      %s45 = sphi 0, %s47
      %s48 = sphi 0, %s45
      %s49 = sphi 0, %s48
      %s65 = sphi 0, %s49
      %s69 = sphi 0, %s69
      %s71 = sphi 0, %s69
      %s72 = sphi 0, %s71
      %s86 = sphi 0, %s72
    $region4: #{tpu_custom_call.1} parent=1 // loop_header_branch
      %12 = sbr.rel (%p10) target = $region8
    $region5: #{tpu_custom_call.1} parent=1 // loop_body
      %s14 = ssub.s32 %s9, 1
      %s15 = ssub.s32 %s9, 2
      %s16 = sadd.s32 %s9, 1
      %s17 = ssub.s32 %s9, %s16
      %p18 = scmp.eq.s32.totalorder %s17, 0
      %s20 = sadd.s32 %s19, 1
      %s21 = scalar_select %p18, %s19, %s20
      %p24 = pneg %p18
      %p25 = scmp.eq.s32.totalorder %s9, 2
      %p26 = por %p24, %p25
      %p27 = scmp.ne.s32.totalorder %s19, %s22
      %p28 = scmp.eq.s32.totalorder %s9, 0
      %p29 = por %p27, %p28
      %p30 = scmp.ne.s32.totalorder %s19, %s22
      %p31 = scmp.eq.s32.totalorder %s14, 2
      %p32 = por %p30, %p31
      %p33 = scmp.ne.s32.totalorder %s22, %s23
      %p34 = scmp.eq.s32.totalorder %s14, 0
      %p35 = por %p33, %p34
      %p36 = scmp.ne.s32.totalorder %s22, %s23
      %p37 = scmp.eq.s32.totalorder %s15, 2
      %p38 = por %p36, %p37
      %p40 = scmp.ne.s32.totalorder %s23, %s39
      %p41 = scmp.eq.s32.totalorder %s15, 0
      %p42 = por %p40, %p41
      %s43 = ssub.s32 %s9, %s16
      %p44 = scmp.eq.s32.totalorder %s43, 0
      %s46 = sadd.s32 %s45, 1
      %s47 = scalar_select %p44, %s45, %s46
      %p50 = pneg %p44
      %p51 = scmp.eq.s32.totalorder %s9, 2
      %p52 = por %p50, %p51
      %p53 = scmp.ne.s32.totalorder %s45, %s48
      %p54 = scmp.eq.s32.totalorder %s9, 0
      %p55 = por %p53, %p54
      %p56 = scmp.ne.s32.totalorder %s45, %s48
      %p57 = scmp.eq.s32.totalorder %s14, 2
      %p58 = por %p56, %p57
      %p59 = scmp.ne.s32.totalorder %s48, %s49
      %p60 = scmp.eq.s32.totalorder %s14, 0
      %p61 = por %p59, %p60
      %p62 = scmp.ne.s32.totalorder %s48, %s49
      %p63 = scmp.eq.s32.totalorder %s15, 2
      %p64 = por %p62, %p63
      %p66 = scmp.ne.s32.totalorder %s49, %s65
      %p67 = scmp.eq.s32.totalorder %s15, 0
      %p68 = por %p66, %p67
      %s70 = sadd.s32 %s69, 1
      %p73 = scmp.eq.s32.totalorder %s9, 2
      %p74 = scmp.ne.s32.totalorder %s69, %s71
      %p75 = scmp.eq.s32.totalorder %s9, 0
      %p76 = por %p74, %p75
      %p77 = scmp.ne.s32.totalorder %s69, %s71
      %p78 = scmp.eq.s32.totalorder %s14, 2
      %p79 = por %p77, %p78
      %p80 = scmp.ne.s32.totalorder %s71, %s72
      %p81 = scmp.eq.s32.totalorder %s14, 0
      %p82 = por %p80, %p81
      %p83 = scmp.ne.s32.totalorder %s71, %s72
      %p84 = scmp.eq.s32.totalorder %s15, 2
      %p85 = por %p83, %p84
      %p87 = scmp.ne.s32.totalorder %s72, %s86
      %p88 = scmp.eq.s32.totalorder %s15, 0
      %p89 = por %p87, %p88
      %p90 = scmp.le.s32.totalorder 1, %s9
      %p91 = scmp.lt.s32.totalorder %s9, 4
      %p92 = pnand %p90, %p91
      %p93 = pneg %p92
      // Predicated region
      $region9: #{tpu_custom_call.1} parent=5 // pred_check
        _
      $region10: #{tpu_custom_call.1} parent=5 // pred_check_branch
        %95 = sbr.rel (%p92) target = $region12
      $region11: #{tpu_custom_call.1} parent=5 // pred_region
        %s96 = ssub.s32 %s9, 1
      $region12: #{tpu_custom_call.1} parent=5 // pred_fallthru
        _
      %p97 = scmp.lt.s32.totalorder %s9, 3
      // Predicated region
      $region13: #{tpu_custom_call.1} parent=5 // pred_check
        %p98 = pneg %p97
      $region14: #{tpu_custom_call.1} parent=5 // pred_check_branch
        %100 = sbr.rel (%p98) target = $region16
      $region15: #{tpu_custom_call.1} parent=5 // pred_region
        // Predicated region
        $region17: #{tpu_custom_call.1} parent=15 // pred_check
          %p101 = pneg %p29
        $region18: #{tpu_custom_call.1} parent=15 // pred_check_branch
          %103 = sbr.rel (%p101) target = $region20
        $region19: #{tpu_custom_call.1} parent=15 // pred_region
          %p104 = scmp.lt.s32.totalorder %s9, 2
          %s105 = scalar_select %p104, %s9, 2
          %s106 = smul.addr %s105, 8
          %s107 = scalar_lea.vmem %s0, %s106
        $region20: #{tpu_custom_call.1} parent=15 // pred_fallthru
          _
        // Predicated region
        $region21: #{tpu_custom_call.1} parent=15 // pred_check
          %p108 = pneg %p55
        $region22: #{tpu_custom_call.1} parent=15 // pred_check_branch
          %110 = sbr.rel (%p108) target = $region24
        $region23: #{tpu_custom_call.1} parent=15 // pred_region
          %p111 = scmp.lt.s32.totalorder %s9, 2
          %s112 = scalar_select %p111, %s9, 2
          %s113 = smul.addr %s112, 8
          %s114 = scalar_lea.vmem %s1, %s113
        $region24: #{tpu_custom_call.1} parent=15 // pred_fallthru
          _
      $region16: #{tpu_custom_call.1} parent=5 // pred_fallthru
        _
      %p115 = scmp.le.s32.totalorder 1, %s9
      %p116 = scmp.lt.s32.totalorder %s9, 4
      %p117 = pnand %p115, %p116
      %p118 = pneg %p117
      // Predicated region
      $region25: #{tpu_custom_call.1} parent=5 // pred_check
        _
      $region26: #{tpu_custom_call.1} parent=5 // pred_check_branch
        %120 = sbr.rel (%p117) target = $region28
      $region27: #{tpu_custom_call.1} parent=5 // pred_region
        %s121 = ssub.s32 %s9, 1
        %p122 = scmp.lt.s32.totalorder %s14, 2
        %s123 = scalar_select %p122, %s14, 2
        %s124 = smul.addr %s123, 8
        %s125 = scalar_lea.vmem %s0, %s124
        %p126 = pneg %p35
        %p127 = pneg %p32
        %p128 = scmp.lt.s32.totalorder %s14, 2
        %s129 = scalar_select %p128, %s14, 2
        %s130 = smul.addr %s129, 8
        %s131 = scalar_lea.vmem %s1, %s130
        %p132 = pneg %p61
        %p133 = pneg %p58
        %p134 = pneg %p82
        %p135 = pneg %p79
        %p136 = scmp.lt.s32.totalorder %s14, 2
        %s137 = scalar_select %p136, %s14, 2
        %s138 = smul.addr %s137, 8
        %s139 = scalar_lea.vmem %s0, %s138
        %p140 = scmp.lt.s32.totalorder %s14, 2
        %s141 = scalar_select %p140, %s14, 2
        %s142 = smul.addr %s141, 8
        %s143 = scalar_lea.vmem %s1, %s142
        %p144 = scmp.eq.s32.totalorder %s14, 0
        // Predicated region
        $region29: #{tpu_custom_call.1} parent=27 // pred_check
          %p145 = pneg %p144
        $region30: #{tpu_custom_call.1} parent=27 // pred_check_branch
          %147 = sbr.rel (%p145) target = $region32
        $region31: #{tpu_custom_call.1} parent=27 // pred_region
          %s148 = scalar_lea.smem [#allocation2], 0
          %149 = sst [smem:[%s148]] 0.0
        $region32: #{tpu_custom_call.1} parent=27 // pred_fallthru
          _
        %v150 = vld [vmem:[%s139] sm:$0xff]
        %v151 = vld [vmem:[%s143] sm:$0xff]
        %vm152 = vcmask 343040
        %v153 = vsel %vm152, %v150, -inf
        %154 = vmax.xlane.f32.xlu0 %v153
        %v155 = vpop.xlane.xlu0 %154
        %v156 = vsub.f32 %v150, %v155
        %v157 = vmul.f32 %v156, 1.442695
        %v158 = vpow.pop %v157
        %v159 = vsel %vm152, %v158, 0.0
        %160 = vadd.xlane.f32.xlu0 %v159
        %v161 = vpop.xlane.xlu0 %160
        %v162 = vlog2.pop %v161
        %v163 = vmul.f32 %v162, 0.6931472
        %v164 = vsel %vm152, %v156, 0.0
        %165 = vadd.xlane.f32.xlu0 %v164
        %v166 = vpop.xlane.xlu0 %165
        %v167 = vmul.f32 %v163, 42.0
        %v168 = vsub.f32 %v166, %v167
        %v169 = vlaneseq
        %v170 = vand.u32 %v169, 127
        %171 = vset.pattern.permute.xlu0 0
        %172 = vperm.xlu0 %171, %v151
        %v173 = vpop.permute.xlu0 %172
        %vm174 = vcmp.eq.s32.totalorder %v170, %v173
        %v175 = vsel %vm174, %v156, 0.0
        %v176 = vsel %vm152, %v175, 0.0
        %177 = vadd.xlane.f32.xlu0 %v176
        %v178 = vpop.xlane.xlu0 %177
        %v179 = vsub.f32 %v178, %v163
        %v180 = vmul.f32 %v168, 0.014634146
        %v181 = vmul.f32 %v179, 0.38536584
        %v182 = vadd.f32 %v180, %v181
        %v183 = vsub.f32 0.0, %v182
        %v184 = vlaneseq
        %v185 = vshrl.u32 %v184, 7
        %s186 = smul.u32 %s14, 8
        %v187 = vstv %s186
        %v188 = vadd.s32 %v187, %v185
        %vm189 = vcmp.lt.s32.totalorder %v188, 20
        %v190 = vsel %vm189, %v183, 0.0
        %s191 = sld [smem:[#allocation2]]
        %vm192 = vcmask 7168
        %v193 = vsel %vm192, %v190, 0.0
        %194 = vadd.xlane.f32.xlu0 %v193
        %v195 = vpop.xlane.xlu0 %194
        %v196 = vrot.slane %v195, 4
        %v197 = vadd.f32 %v195, %v196
        %v198 = vrot.slane %v197, 2
        %v199 = vadd.f32 %v197, %v198
        %v200 = vrot.slane %v199, 1
        %v201 = vadd.f32 %v199, %v200
        %s202 = vtos %v201
        %s203 = sadd.f32 %s191, %s202
        %s204 = scalar_lea.smem [#allocation2], 0
        %205 = sst [smem:[%s204]] %s203
        %p206 = scmp.eq.s32.totalorder %s14, 2
        // Predicated region
        $region33: #{tpu_custom_call.1} parent=27 // pred_check
          %p207 = pneg %p206
        $region34: #{tpu_custom_call.1} parent=27 // pred_check_branch
          %209 = sbr.rel (%p207) target = $region36
        $region35: #{tpu_custom_call.1} parent=27 // pred_region
          %s210 = sld [smem:[#allocation2]]
          %v211 = vrcp.pop 20.0
          %s212 = vtos %v211
          %s213 = smul.f32 %s210, %s212
          %s214 = scalar_lea.smem [#allocation3], 0
          %215 = sst [smem:[%s214]] %s213
        $region36: #{tpu_custom_call.1} parent=27 // pred_fallthru
          _
        // Predicated region
        $region37: #{tpu_custom_call.1} parent=27 // pred_check
          %p216 = pneg %p79
        $region38: #{tpu_custom_call.1} parent=27 // pred_check_branch
          %218 = sbr.rel (%p216) target = $region40
        $region39: #{tpu_custom_call.1} parent=27 // pred_region
          %s220 = ssub.s32 16, 16
          %221 = vsyncadd [#allocation4], %s220
          %224 = dma.smem_to_hbm [#allocation3], 16, %s2, [#allocation4]
        $region40: #{tpu_custom_call.1} parent=27 // pred_fallthru
          _
        // Predicated region
        $region41: #{tpu_custom_call.1} parent=27 // pred_check
          %p225 = pneg %p79
        $region42: #{tpu_custom_call.1} parent=27 // pred_check_branch
          %227 = sbr.rel (%p225) target = $region44
        $region43: #{tpu_custom_call.1} parent=27 // pred_region
          %228 = dma.done [#allocation4], 16
        $region44: #{tpu_custom_call.1} parent=27 // pred_fallthru
          _
        %229 = sfence
      $region28: #{tpu_custom_call.1} parent=5 // pred_fallthru
        _
      %p230 = scmp.le.s32.totalorder 2, %s9
      // Predicated region
      $region45: #{tpu_custom_call.1} parent=5 // pred_check
        %p231 = pneg %p230
      $region46: #{tpu_custom_call.1} parent=5 // pred_check_branch
        %233 = sbr.rel (%p231) target = $region48
      $region47: #{tpu_custom_call.1} parent=5 // pred_region
        %s234 = ssub.s32 %s9, 2
      $region48: #{tpu_custom_call.1} parent=5 // pred_fallthru
        _
    $region6: #{tpu_custom_call.1} parent=1 // loop_footer
      %s13 = sadd.s32 1, %s9
    $region7: #{tpu_custom_call.1} parent=1 // loop_footer_branch
      %8 = sbr.rel target = $region3
    $region8: #{tpu_custom_call.1} parent=1 // loop_exit
      _
    %235 = vsyncpa [#allocation4], 1
    %s236 = scalar_lea.sflag [#allocation4], 1
    %237 = vsyncpa %s236, 1

</llo_original>
